<compile_context>
chip_gen: v7x
topology: tpu7x:2x2x1
jax: 0.10.0
libtpu: 0.0.40
codegen_flags: <defaults>
</compile_context>

<pallas_src>
import functools

import jax
import jax.numpy as jnp
from jax.experimental import pallas as pl
from jax.experimental.pallas import tpu as pltpu

EPS = 1e-6


# ------------------------------ small helpers ------------------------------- #

def _round_up(x, m):
    return (x + m - 1) // m * m


def _choose_row_tile(m, max_tile=2048):
    """Row tile for the (rows, feature) kernels.

    - m <= 16: one block equal to the full row extent (always a legal block shape).
    - otherwise: multiple of 16 (sublane-safe for bf16 and f32), capped at max_tile,
      and at ceil(m/2) so the row grid has >= 2 "parallel" steps (v7x megacore).
    """
    if m <= 16:
        return m
    half = _round_up((m + 1) // 2, 16)
    return max(16, min(max_tile, half))


# ----------------------------- Pallas kernels ------------------------------- #

def _combine_kernel(x_ref, feat_ref, scale_ref, inv_ref, wx_ref, wcat_ref, b_ref, o_ref):
    """Fused PNA combine:
         relu( [x, feat*1, feat*scale, feat*(1/scale)] @ W + b )
       computed as a single (TM, 4*Din) @ (4*Din, 3*Dout) MXU pass P plus x@Wx, then
         acc = x@Wx + P[:, :D] + scale*P[:, D:2D] + inv*P[:, 2D:3D] + b
       (per-row scalars factor out of the matmul).  bf16 MXU inputs, f32 accumulation.
    """
    dout = wx_ref.shape[1]
    p = jnp.dot(feat_ref[...], wcat_ref[...], preferred_element_type=jnp.float32)
    acc = jnp.dot(x_ref[...], wx_ref[...], preferred_element_type=jnp.float32)
    acc = acc + p[:, :dout]
    acc = acc + scale_ref[...] * p[:, dout:2 * dout]
    acc = acc + inv_ref[...] * p[:, 2 * dout:3 * dout]
    acc = acc + b_ref[...]
    o_ref[...] = jnp.maximum(acc, 0.0).astype(o_ref.dtype)


def _mlp_kernel(x_ref, w1_ref, b1_ref, w2_ref, b2_ref, o_ref):
    """Fused 2-layer scorer: relu(x@W1 + b1) . w2 + b2.  The hidden never leaves VMEM;
    the 1-wide second layer is a VPU multiply + lane reduction (no N=1 MXU pass)."""
    h = jnp.dot(x_ref[...], w1_ref[...], preferred_element_type=jnp.float32) + b1_ref[...]
    h = jnp.maximum(h, 0.0)
    s = jnp.sum(h * w2_ref[...], axis=-1, keepdims=True) + b2_ref[...]
    o_ref[...] = s.astype(o_ref.dtype)


# ------------------------------ kernel wrappers ------------------------------ #

def fused_combine(x2d, feat2d, scale_rows, inv_rows, w_x, w_cat, bias):
    """x2d (M, Din), feat2d (M, 4*Din), per-row scale/inv (M, 1) -> (M, Dout) f32."""
    M, Din = x2d.shape
    Dout = w_x.shape[1]
    TM = _choose_row_tile(M)

    return pl.pallas_call(
        _combine_kernel,
        out_shape=jax.ShapeDtypeStruct((M, Dout), jnp.float32),
        grid=(pl.cdiv(M, TM),),
        in_specs=[
            pl.BlockSpec((TM, Din), lambda i: (i, 0)),            # x (bf16)
            pl.BlockSpec((TM, 4 * Din), lambda i: (i, 0)),        # stacked stats (bf16)
            pl.BlockSpec((TM, 1), lambda i: (i, 0)),              # scale (f32)
            pl.BlockSpec((TM, 1), lambda i: (i, 0)),              # 1/scale (f32)
            pl.BlockSpec((Din, Dout), lambda i: (0, 0)),          # W_x (VMEM-resident)
            pl.BlockSpec((4 * Din, 3 * Dout), lambda i: (0, 0)),  # W0|W1|W2 along N
            pl.BlockSpec((1, Dout), lambda i: (0, 0)),            # bias
        ],
        out_specs=pl.BlockSpec((TM, Dout), lambda i: (i, 0)),
        compiler_params=pltpu.CompilerParams(dimension_semantics=("parallel",)),
    )(x2d.astype(jnp.bfloat16),
      feat2d.astype(jnp.bfloat16),
      scale_rows.astype(jnp.float32),
      inv_rows.astype(jnp.float32),
      w_x.astype(jnp.bfloat16),
      w_cat.astype(jnp.bfloat16),
      bias.reshape(1, Dout).astype(jnp.float32))


def fused_mlp(x, w1, b1, w2, b2):
    """(M, F) -> (M, 1): relu(x@W1+b1) . w2 + b2 in one kernel (no HBM hidden)."""
    M, F = x.shape
    TM = _choose_row_tile(M)

    return pl.pallas_call(
        _mlp_kernel,
        out_shape=jax.ShapeDtypeStruct((M, 1), jnp.float32),
        grid=(pl.cdiv(M, TM),),
        in_specs=[
            pl.BlockSpec((TM, F), lambda i: (i, 0)),
            pl.BlockSpec((F, F), lambda i: (0, 0)),
            pl.BlockSpec((1, F), lambda i: (0, 0)),
            pl.BlockSpec((1, F), lambda i: (0, 0)),   # w2 as a row (VPU path)
            pl.BlockSpec((1, 1), lambda i: (0, 0)),
        ],
        out_specs=pl.BlockSpec((TM, 1), lambda i: (i, 0)),
        compiler_params=pltpu.CompilerParams(dimension_semantics=("parallel",)),
    )(x.astype(jnp.bfloat16),
      w1.astype(jnp.bfloat16),
      b1.reshape(1, F).astype(jnp.float32),
      w2.reshape(1, F).astype(jnp.float32),
      b2.reshape(1, 1).astype(jnp.float32))


# --------------------------- model building blocks -------------------------- #

def conv_layer(lp, x, boundary, src, dst, edge_rel, edge_weight, rel_query, num_node):
    """GeneralizedRelationalConvNBF: distmult message + PNA aggregate + fused combine."""
    N, B, Din = x.shape
    Dout = lp["b_comb"].shape[0]

    # project=True: (2R, Din) relation projection is tiny -> plain JAX (a standalone
    # pallas_call would be pure fixed overhead at M ~ 6).
    rel_emb = rel_query @ lp["w_rel"] + lp["b_rel"]                       # (2R, Din)

    node_input = x[src]                                                   # (E, B, Din)
    edge_input = rel_emb[edge_rel][:, None, :]                            # (E, 1, Din)
    message = edge_input * node_input                                     # distmult

    # boundary appended as per-node self-loop messages (NBFNet trick); guarantees
    # every destination segment is non-empty for segment_max/min.
    all_msg = jnp.concatenate([message, boundary], axis=0)                # (E+N, B, Din)
    all_dst = jnp.concatenate([dst, jnp.arange(num_node, dtype=dst.dtype)], axis=0)
    all_w = jnp.concatenate([edge_weight, jnp.ones((num_node,), edge_weight.dtype)], axis=0)

    wm = all_msg * all_w[:, None, None]

    # TODO(synk): ragged per-destination aggregation stays in XLA segment_* ops (see
    # header); would need a CSR + scalar-prefetch Pallas kernel for a single-pass sweep.
    count = jax.ops.segment_sum(jnp.ones_like(all_w), all_dst, num_segments=num_node)
    count = jnp.maximum(count, 1.0)[:, None, None]
    mean = jax.ops.segment_sum(wm, all_dst, num_segments=num_node) / count
    sq_mean = jax.ops.segment_sum(wm * all_msg, all_dst, num_segments=num_node) / count
    mx = jax.ops.segment_max(wm, all_dst, num_segments=num_node)
    mn = jax.ops.segment_min(wm, all_dst, num_segments=num_node)
    std = jnp.sqrt(jnp.maximum(sq_mean - mean ** 2, EPS))

    # Block-ordered stats [mean | max | min | std]: a plain lane-axis concat (no
    # stat-interleave relayout pass).  The combine weight rows are permuted once below
    # to match this ordering, so the result is identical to torch's d*4+stat layout.
    features = jnp.concatenate([mean, mx, mn, std], axis=-1)              # (N, B, 4*Din)

    degree_out = jax.ops.segment_sum(edge_weight, dst, num_segments=num_node)
    degree_out = degree_out[:, None] + 1.0                                # (N, 1)
    scale = jnp.log(degree_out)
    scale = scale / jnp.maximum(jnp.mean(scale), EPS)                     # guard vs 0-mean
    inv_scale = 1.0 / jnp.maximum(scale, 1e-2)                            # torch: clamp(1e-2)

    M = num_node * B
    scale_rows = jnp.broadcast_to(scale[:, None, :], (num_node, B, 1)).reshape(M, 1)
    inv_rows = jnp.broadcast_to(inv_scale[:, None, :], (num_node, B, 1)).reshape(M, 1)

    # Re-layout W_comb for the fused kernel (tiny (13*Din, Dout) tensor, once per layer).
    # Original combine input ordering is [x (Din) ; update (12*Din)], update row index
    # Din + (d*4 + stat)*3 + s with s in {1, scale, 1/scale}.  We want rows in block
    # order (stat*Din + d) and the three scale variants concatenated along N.
    w_comb = lp["w_comb"]
    w_x = w_comb[:Din]                                                    # (Din, Dout)
    w_cat = jnp.transpose(w_comb[Din:].reshape(Din, 4, 3, Dout),
                          (1, 0, 2, 3)).reshape(4 * Din, 3 * Dout)        # (4*Din, 3*Dout)

    out = fused_combine(x.reshape(M, Din), features.reshape(M, 4 * Din),
                        scale_rows, inv_rows, w_x, w_cat, lp["b_comb"])
    return out.reshape(num_node, B, Dout)


def bellmanford(params, rel_query, src, dst, edge_rel, edge_weight,
                num_node, h_index, r_index, input_dim):
    B = h_index.shape[0]
    query = rel_query[r_index]                                            # (B, D0)
    boundary = jnp.zeros((num_node, B, input_dim), jnp.float32)
    boundary = boundary.at[h_index, jnp.arange(B)].add(query)

    layer_input = boundary
    hiddens = []
    for lp in params["layers"]:
        hidden = conv_layer(lp, layer_input, boundary, src, dst, edge_rel,
                            edge_weight, rel_query, num_node)
        hiddens.append(hidden)                                            # short_cut=False
        layer_input = hidden

    node_query = jnp.broadcast_to(query[None], (num_node, B, input_dim))
    # concat_hidden=False -> last hidden only
    return jnp.concatenate([hiddens[-1], node_query], axis=-1)            # (N, B, feat)


def transfer_nbfnet_forward(params, rel_query, edge_list, h_index, t_index, r_index, *,
                            num_node, num_relation, input_dim):
    shape = h_index.shape

    # graph.undirected(add_inverse=True): add flipped edges with relation+num_relation
    src = jnp.concatenate([edge_list[:, 0], edge_list[:, 1]])
    dst = jnp.concatenate([edge_list[:, 1], edge_list[:, 0]])
    rel = jnp.concatenate([edge_list[:, 2], edge_list[:, 2] + num_relation])
    edge_weight = jnp.ones((src.shape[0],), jnp.float32)

    # negative_sample_to_tail
    is_t_neg = jnp.all(h_index == h_index[:, :1], axis=-1, keepdims=True)
    h_new = jnp.where(is_t_neg, h_index, t_index)
    t_new = jnp.where(is_t_neg, t_index, h_index)
    r_new = jnp.where(is_t_neg, r_index, r_index + num_relation)
    h_index, t_index, r_index = h_new, t_new, r_new

    output = bellmanford(params, rel_query, src, dst, rel, edge_weight,
                         num_node, h_index[:, 0], r_index[:, 0], input_dim)  # (N, B, F)

    B = h_index.shape[0]
    # Direct gather of the K tail nodes per query (no (N,B,F) transpose relayout).
    feature = output[t_index, jnp.arange(B)[:, None]]                     # (B, K, F)
    _, K, F = feature.shape

    # scoring MLP (2 layers) fused into a single Pallas kernel
    score = fused_mlp(feature.reshape(B * K, F),
                      params["mlp"]["w1"], params["mlp"]["b1"],
                      params["mlp"]["w2"], params["mlp"]["b2"])           # (B*K, 1)
    return score.reshape(shape)


# ------------------------------ parameter init ------------------------------ #

def init_params(key, input_dim, hidden_dims):
    dims = [input_dim] + list(hidden_dims)
    params = {"layers": []}
    k = key
    for i in range(len(dims) - 1):
        k, k1, k2 = jax.random.split(k, 3)
        params["layers"].append({
            # relation projection (project=True): query_input_dim -> layer input dim
            "w_rel": jax.random.normal(k1, (input_dim, dims[i]), jnp.float32) * 0.1,
            "b_rel": jnp.zeros((dims[i],), jnp.float32),
            # PNA combine: Linear(13 * Din, Dout)
            "w_comb": jax.random.normal(k2, (13 * dims[i], dims[i + 1]), jnp.float32) * 0.05,
            "b_comb": jnp.zeros((dims[i + 1],), jnp.float32),
        })
    feat = hidden_dims[-1] + input_dim                                    # concat_hidden=False
    k, k1, k2 = jax.random.split(k, 3)
    params["mlp"] = {
        "w1": jax.random.normal(k1, (feat, feat), jnp.float32) * 0.1,
        "b1": jnp.zeros((feat,), jnp.float32),
        "w2": jax.random.normal(k2, (feat, 1), jnp.float32) * 0.1,
        "b2": jnp.zeros((1,), jnp.float32),
    }
    # dist_embed (nn.Embedding(10, input_dim)) is unused in forward; not materialized.
    return params


# ---------------------------------- main ------------------------------------ #

if __name__ == "__main__":
    input_dim = 32
    hidden_dims = [32, 32]
    num_relation = 3
    double_relation = 2 * num_relation
    num_node = 16
    num_edge = 24
    B, K = 2, 4   # batch of queries, (1 positive + 3 negative) tails per query

    key = jax.random.PRNGKey(0)
    k_param, k_rel, k_e1, k_e2, k_h, k_t, k_r = jax.random.split(key, 7)

    params = init_params(k_param, input_dim, hidden_dims)
    rel_query = jax.random.normal(k_rel, (double_relation, input_dim), jnp.float32)

    src_dst = jax.random.randint(k_e1, (num_edge, 2), 0, num_node, dtype=jnp.int32)
    e_rel = jax.random.randint(k_e2, (num_edge, 1), 0, num_relation, dtype=jnp.int32)
    edge_list = jnp.concatenate([src_dst, e_rel], axis=-1)                # (E, 3)

    h_index = jnp.broadcast_to(
        jax.random.randint(k_h, (B, 1), 0, num_node, dtype=jnp.int32), (B, K))
    t_index = jax.random.randint(k_t, (B, K), 0, num_node, dtype=jnp.int32)
    r_index = jnp.broadcast_to(
        jax.random.randint(k_r, (B, 1), 0, num_relation, dtype=jnp.int32), (B, K))

    fwd = jax.jit(functools.partial(
        transfer_nbfnet_forward,
        num_node=num_node, num_relation=num_relation, input_dim=input_dim))

    score = fwd(params, rel_query, edge_list, h_index, t_index, r_index)
    score = jax.block_until_ready(score)
    assert score.shape == (B, K), score.shape
    assert bool(jnp.all(jnp.isfinite(score)))
    print("KERNEL_OK")
</pallas_src>

<mosaic_0001>
module attributes {stable_mosaic.version = 11 : i64} {
  func.func private @main(%arg0: i32) attributes {dimension_semantics = [#tpu.dimension_semantics<core_parallel>], iteration_bounds = array<i64: 2>, tpu.core_type = #tpu.core_type<sc_scalar_subcore>, window_params = []} {
    return
  }
}

module attributes {stable_mosaic.version = 11 : i64} {
  func.func private @main(%arg0: i32) attributes {dimension_semantics = [#tpu.dimension_semantics<core_parallel>], iteration_bounds = array<i64: 2>, tpu.core_type = #tpu.core_type<sc_scalar_subcore>, window_params = []} {
    return
  }
}

module attributes {stable_mosaic.version = 11 : i64} {
  func.func @_combine_kernel(%arg0: i32, %arg1: memref<16x32xbf16, #tpu.memory_space<vmem>>, %arg2: memref<16x128xbf16, #tpu.memory_space<vmem>>, %arg3: memref<16x1xf32, #tpu.memory_space<vmem>>, %arg4: memref<16x1xf32, #tpu.memory_space<vmem>>, %arg5: memref<32x32xbf16, #tpu.memory_space<vmem>>, %arg6: memref<128x96xbf16, #tpu.memory_space<vmem>>, %arg7: memref<1x32xf32, #tpu.memory_space<vmem>>, %arg8: memref<16x32xf32, #tpu.memory_space<vmem>>) attributes {dimension_semantics = [#tpu.dimension_semantics<parallel>], iteration_bounds = array<i64: 2>, scalar_prefetch = 0 : i64, scratch_operands = 0 : i64, tpu.core_type = #tpu.core_type<tc>, window_params = [{transform_indices = @transform_0, window_bounds = array<i64: 16, 32>}, {transform_indices = @transform_1, window_bounds = array<i64: 16, 128>}, {transform_indices = @transform_2, window_bounds = array<i64: 16, 1>}, {transform_indices = @transform_3, window_bounds = array<i64: 16, 1>}, {pipeline_mode = #tpu.pipeline_mode<synchronous>, transform_indices = @transform_4, window_bounds = array<i64: 32, 32>}, {pipeline_mode = #tpu.pipeline_mode<synchronous>, transform_indices = @transform_5, window_bounds = array<i64: 128, 96>}, {pipeline_mode = #tpu.pipeline_mode<synchronous>, transform_indices = @transform_6, window_bounds = array<i64: 1, 32>}, {transform_indices = @transform_7, window_bounds = array<i64: 16, 32>}]} {
    %c0 = arith.constant 0 : index
    %c0_0 = arith.constant 0 : index
    %0 = vector.load %arg2[%c0, %c0_0] : memref<16x128xbf16, #tpu.memory_space<vmem>>, vector<16x128xbf16>
    %c0_1 = arith.constant 0 : index
    %c0_2 = arith.constant 0 : index
    %1 = vector.load %arg6[%c0_1, %c0_2] : memref<128x96xbf16, #tpu.memory_space<vmem>>, vector<128x96xbf16>
    %cst = arith.constant dense<0.000000e+00> : vector<16x96xf32>
    %2 = tpu.matmul %0, %1, %cst {dimension_numbers = #tpu.dot_dimension_numbers<[1], [0], [0], [1], [0, 0, 1, 1], [], []>} : vector<16x128xbf16>, vector<128x96xbf16>, vector<16x96xf32> -> vector<16x96xf32>
    %c0_3 = arith.constant 0 : index
    %c0_4 = arith.constant 0 : index
    %3 = vector.load %arg1[%c0_3, %c0_4] : memref<16x32xbf16, #tpu.memory_space<vmem>>, vector<16x32xbf16>
    %c0_5 = arith.constant 0 : index
    %c0_6 = arith.constant 0 : index
    %4 = vector.load %arg5[%c0_5, %c0_6] : memref<32x32xbf16, #tpu.memory_space<vmem>>, vector<32x32xbf16>
    %cst_7 = arith.constant dense<0.000000e+00> : vector<16x32xf32>
    %5 = tpu.matmul %3, %4, %cst_7 {dimension_numbers = #tpu.dot_dimension_numbers<[1], [0], [0], [1], [0, 0, 1, 1], [], []>} : vector<16x32xbf16>, vector<32x32xbf16>, vector<16x32xf32> -> vector<16x32xf32>
    %6 = vector.extract_strided_slice %2 {offsets = [0, 0], sizes = [16, 32], strides = [1, 1]} : vector<16x96xf32> to vector<16x32xf32>
    %7 = arith.addf %5, %6 : vector<16x32xf32>
    %c0_8 = arith.constant 0 : index
    %c0_9 = arith.constant 0 : index
    %8 = vector.load %arg3[%c0_8, %c0_9] : memref<16x1xf32, #tpu.memory_space<vmem>>, vector<16x1xf32>
    %9 = vector.extract_strided_slice %2 {offsets = [0, 32], sizes = [16, 32], strides = [1, 1]} : vector<16x96xf32> to vector<16x32xf32>
    %10 = vector.broadcast %8 : vector<16x1xf32> to vector<16x32xf32>
    %11 = arith.mulf %10, %9 : vector<16x32xf32>
    %12 = arith.addf %7, %11 : vector<16x32xf32>
    %c0_10 = arith.constant 0 : index
    %c0_11 = arith.constant 0 : index
    %13 = vector.load %arg4[%c0_10, %c0_11] : memref<16x1xf32, #tpu.memory_space<vmem>>, vector<16x1xf32>
    %14 = vector.extract_strided_slice %2 {offsets = [0, 64], sizes = [16, 32], strides = [1, 1]} : vector<16x96xf32> to vector<16x32xf32>
    %15 = vector.broadcast %13 : vector<16x1xf32> to vector<16x32xf32>
    %16 = arith.mulf %15, %14 : vector<16x32xf32>
    %17 = arith.addf %12, %16 : vector<16x32xf32>
    %c0_12 = arith.constant 0 : index
    %c0_13 = arith.constant 0 : index
    %18 = vector.load %arg7[%c0_12, %c0_13] : memref<1x32xf32, #tpu.memory_space<vmem>>, vector<1x32xf32>
    %19 = vector.broadcast %18 : vector<1x32xf32> to vector<16x32xf32>
    %20 = arith.addf %17, %19 : vector<16x32xf32>
    %cst_14 = arith.constant 0.000000e+00 : f32
    %21 = vector.broadcast %cst_14 : f32 to vector<16x32xf32>
    %22 = arith.maximumf %20, %21 : vector<16x32xf32>
    %c0_15 = arith.constant 0 : index
    %c0_16 = arith.constant 0 : index
    %23 = vector.load %arg8[%c0_15, %c0_16] : memref<16x32xf32, #tpu.memory_space<vmem>>, vector<16x32xf32>
    tpu.vector_store %arg8[%c0_15, %c0_16], %22 {strides = array<i32>} : memref<16x32xf32, #tpu.memory_space<vmem>>, vector<16x32xf32>,
    return
  }
  func.func @transform_0(%arg0: i32) -> (i32, i32) {
    %c0_i32 = arith.constant 0 : i32
    %c0_i32_0 = arith.constant 0 : i32
    return %arg0, %c0_i32 : i32, i32
  }
  func.func @transform_1(%arg0: i32) -> (i32, i32) {
    %c0_i32 = arith.constant 0 : i32
    %c0_i32_0 = arith.constant 0 : i32
    return %arg0, %c0_i32 : i32, i32
  }
  func.func @transform_2(%arg0: i32) -> (i32, i32) {
    %c0_i32 = arith.constant 0 : i32
    %c0_i32_0 = arith.constant 0 : i32
    return %arg0, %c0_i32 : i32, i32
  }
  func.func @transform_3(%arg0: i32) -> (i32, i32) {
    %c0_i32 = arith.constant 0 : i32
    %c0_i32_0 = arith.constant 0 : i32
    return %arg0, %c0_i32 : i32, i32
  }
  func.func @transform_4(%arg0: i32) -> (i32, i32) {
    %c0_i32 = arith.constant 0 : i32
    %c0_i32_0 = arith.constant 0 : i32
    %c0_i32_1 = arith.constant 0 : i32
    return %c0_i32, %c0_i32_0 : i32, i32
  }
  func.func @transform_5(%arg0: i32) -> (i32, i32) {
    %c0_i32 = arith.constant 0 : i32
    %c0_i32_0 = arith.constant 0 : i32
    %c0_i32_1 = arith.constant 0 : i32
    return %c0_i32, %c0_i32_0 : i32, i32
  }
  func.func @transform_6(%arg0: i32) -> (i32, i32) {
    %c0_i32 = arith.constant 0 : i32
    %c0_i32_0 = arith.constant 0 : i32
    %c0_i32_1 = arith.constant 0 : i32
    return %c0_i32, %c0_i32_0 : i32, i32
  }
  func.func @transform_7(%arg0: i32) -> (i32, i32) {
    %c0_i32 = arith.constant 0 : i32
    %c0_i32_0 = arith.constant 0 : i32
    return %arg0, %c0_i32 : i32, i32
  }
}

module attributes {stable_mosaic.version = 11 : i64} {
  func.func @_mlp_kernel(%arg0: i32, %arg1: memref<8x64xbf16, #tpu.memory_space<vmem>>, %arg2: memref<64x64xbf16, #tpu.memory_space<vmem>>, %arg3: memref<1x64xf32, #tpu.memory_space<vmem>>, %arg4: memref<1x64xf32, #tpu.memory_space<vmem>>, %arg5: memref<1x1xf32, #tpu.memory_space<vmem>>, %arg6: memref<8x1xf32, #tpu.memory_space<vmem>>) attributes {dimension_semantics = [#tpu.dimension_semantics<parallel>], iteration_bounds = array<i64: 1>, scalar_prefetch = 0 : i64, scratch_operands = 0 : i64, tpu.core_type = #tpu.core_type<tc>, window_params = [{transform_indices = @transform_0, window_bounds = array<i64: 8, 64>}, {pipeline_mode = #tpu.pipeline_mode<synchronous>, transform_indices = @transform_1, window_bounds = array<i64: 64, 64>}, {pipeline_mode = #tpu.pipeline_mode<synchronous>, transform_indices = @transform_2, window_bounds = array<i64: 1, 64>}, {pipeline_mode = #tpu.pipeline_mode<synchronous>, transform_indices = @transform_3, window_bounds = array<i64: 1, 64>}, {pipeline_mode = #tpu.pipeline_mode<synchronous>, transform_indices = @transform_4, window_bounds = array<i64: 1, 1>}, {transform_indices = @transform_5, window_bounds = array<i64: 8, 1>}]} {
    %c0 = arith.constant 0 : index
    %c0_0 = arith.constant 0 : index
    %0 = vector.load %arg1[%c0, %c0_0] : memref<8x64xbf16, #tpu.memory_space<vmem>>, vector<8x64xbf16>
    %c0_1 = arith.constant 0 : index
    %c0_2 = arith.constant 0 : index
    %1 = vector.load %arg2[%c0_1, %c0_2] : memref<64x64xbf16, #tpu.memory_space<vmem>>, vector<64x64xbf16>
    %cst = arith.constant dense<0.000000e+00> : vector<8x64xf32>
    %2 = tpu.matmul %0, %1, %cst {dimension_numbers = #tpu.dot_dimension_numbers<[1], [0], [0], [1], [0, 0, 1, 1], [], []>} : vector<8x64xbf16>, vector<64x64xbf16>, vector<8x64xf32> -> vector<8x64xf32>
    %c0_3 = arith.constant 0 : index
    %c0_4 = arith.constant 0 : index
    %3 = vector.load %arg3[%c0_3, %c0_4] : memref<1x64xf32, #tpu.memory_space<vmem>>, vector<1x64xf32>
    %4 = vector.broadcast %3 : vector<1x64xf32> to vector<8x64xf32>
    %5 = arith.addf %2, %4 : vector<8x64xf32>
    %cst_5 = arith.constant 0.000000e+00 : f32
    %6 = vector.broadcast %cst_5 : f32 to vector<8x64xf32>
    %7 = arith.maximumf %5, %6 : vector<8x64xf32>
    %c0_6 = arith.constant 0 : index
    %c0_7 = arith.constant 0 : index
    %8 = vector.load %arg4[%c0_6, %c0_7] : memref<1x64xf32, #tpu.memory_space<vmem>>, vector<1x64xf32>
    %9 = vector.broadcast %8 : vector<1x64xf32> to vector<8x64xf32>
    %10 = arith.mulf %7, %9 : vector<8x64xf32>
    %cst_8 = arith.constant dense<0.000000e+00> : vector<8xf32>
    %11 = vector.multi_reduction <add>, %10, %cst_8 [1] : vector<8x64xf32> to vector<8xf32>
    %12 = vector.shape_cast %11 : vector<8xf32> to vector<8x1xf32>
    %c0_9 = arith.constant 0 : index
    %c0_10 = arith.constant 0 : index
    %13 = vector.load %arg5[%c0_9, %c0_10] : memref<1x1xf32, #tpu.memory_space<vmem>>, vector<1x1xf32>
    %14 = vector.broadcast %13 : vector<1x1xf32> to vector<8x1xf32>
    %15 = arith.addf %12, %14 : vector<8x1xf32>
    %c0_11 = arith.constant 0 : index
    %c0_12 = arith.constant 0 : index
    %16 = vector.load %arg6[%c0_11, %c0_12] : memref<8x1xf32, #tpu.memory_space<vmem>>, vector<8x1xf32>
    tpu.vector_store %arg6[%c0_11, %c0_12], %15 {strides = array<i32>} : memref<8x1xf32, #tpu.memory_space<vmem>>, vector<8x1xf32>,
    return
  }
  func.func @transform_0(%arg0: i32) -> (i32, i32) {
    %c0_i32 = arith.constant 0 : i32
    %c0_i32_0 = arith.constant 0 : i32
    return %arg0, %c0_i32 : i32, i32
  }
  func.func @transform_1(%arg0: i32) -> (i32, i32) {
    %c0_i32 = arith.constant 0 : i32
    %c0_i32_0 = arith.constant 0 : i32
    %c0_i32_1 = arith.constant 0 : i32
    return %c0_i32, %c0_i32_0 : i32, i32
  }
  func.func @transform_2(%arg0: i32) -> (i32, i32) {
    %c0_i32 = arith.constant 0 : i32
    %c0_i32_0 = arith.constant 0 : i32
    %c0_i32_1 = arith.constant 0 : i32
    return %c0_i32, %c0_i32_0 : i32, i32
  }
  func.func @transform_3(%arg0: i32) -> (i32, i32) {
    %c0_i32 = arith.constant 0 : i32
    %c0_i32_0 = arith.constant 0 : i32
    %c0_i32_1 = arith.constant 0 : i32
    return %c0_i32, %c0_i32_0 : i32, i32
  }
  func.func @transform_4(%arg0: i32) -> (i32, i32) {
    %c0_i32 = arith.constant 0 : i32
    %c0_i32_0 = arith.constant 0 : i32
    %c0_i32_1 = arith.constant 0 : i32
    return %c0_i32, %c0_i32_0 : i32, i32
  }
  func.func @transform_5(%arg0: i32) -> (i32, i32) {
    %c0_i32 = arith.constant 0 : i32
    %c0_i32_0 = arith.constant 0 : i32
    return %arg0, %c0_i32 : i32, i32
  }
}

</mosaic_0001>

<llo_original>
// kernel: transfer_nbfnet_forward.5
$region0: #{transfer_nbfnet_forward.5}
  #allocation0 [shape = 'u32[]', space=smem, size = 0x4, offset = 0x4, fixed_abs, tag = 'smem constant byte address 0x4 - core index']
  #allocation1 [shape = 'u32[144,128]{1,0:T(1,128)}', space=vmem, size = 0x12000, scoped, tag = 'internal scratch']
  #allocation2 [shape = 'f32[1,1]{1,0:T(1,128)S(1)}', space=vmem, size = 0x200, scoped, tag = 'scoped memory for transfer_nbfnet_forward.5']
  %s0 = inlined_call_operand.vmem [shape: bf16[8,64], index: 0, kind: input, shape index: {}]
  %s1 = inlined_call_operand.vmem [shape: bf16[64,64], index: 1, kind: input, shape index: {}]
  %s2 = inlined_call_operand.vmem [shape: f32[1,64], index: 2, kind: input, shape index: {}]
  %s3 = inlined_call_operand.vmem [shape: f32[1,64], index: 3, kind: input, shape index: {}]
  %s4 = inlined_call_operand.<no memory space> [shape: f32[1,1], index: 4, kind: input, shape index: {}]
  %s5 = inlined_call_operand.vmem [shape: f32[8,1], index: 5, kind: output, shape index: {}]
  %s6 = sld [smem:[#allocation0]]
  $region30: #{transfer_nbfnet_forward.5} parent=0
    _
  %s8 = ssub.s32 1, %s6
  %s9 = scalar_select 0, %s8, %s6
  %v10 = vstv %s4
  %11 = vst [vmem:[#allocation2] sm:$0x1] %v10
  // Predicated region
  $region2: #{transfer_nbfnet_forward.5} parent=0 // pred_check
    _
  $region3: #{transfer_nbfnet_forward.5} parent=0 // pred_check_branch
    %13 = sbr.rel (0) target = $region5
  $region4: #{transfer_nbfnet_forward.5} parent=0 // pred_region
    _
  $region5: #{transfer_nbfnet_forward.5} parent=0 // pred_fallthru
    _
  // Predicated region
  $region6: #{transfer_nbfnet_forward.5} parent=0 // pred_check
    _
  $region7: #{transfer_nbfnet_forward.5} parent=0 // pred_check_branch
    %15 = sbr.rel (0) target = $region9
  $region8: #{transfer_nbfnet_forward.5} parent=0 // pred_region
    _
  $region9: #{transfer_nbfnet_forward.5} parent=0 // pred_fallthru
    _
  // Predicated region
  $region10: #{transfer_nbfnet_forward.5} parent=0 // pred_check
    _
  $region11: #{transfer_nbfnet_forward.5} parent=0 // pred_check_branch
    %17 = sbr.rel (0) target = $region13
  $region12: #{transfer_nbfnet_forward.5} parent=0 // pred_region
    _
  $region13: #{transfer_nbfnet_forward.5} parent=0 // pred_fallthru
    _
  // Predicated region
  $region14: #{transfer_nbfnet_forward.5} parent=0 // pred_check
    _
  $region15: #{transfer_nbfnet_forward.5} parent=0 // pred_check_branch
    %19 = sbr.rel (0) target = $region17
  $region16: #{transfer_nbfnet_forward.5} parent=0 // pred_region
    _
  $region17: #{transfer_nbfnet_forward.5} parent=0 // pred_fallthru
    _
  // Predicated region
  $region18: #{transfer_nbfnet_forward.5} parent=0 // pred_check
    _
  $region19: #{transfer_nbfnet_forward.5} parent=0 // pred_check_branch
    %21 = sbr.rel (0) target = $region21
  $region20: #{transfer_nbfnet_forward.5} parent=0 // pred_region
    _
  $region21: #{transfer_nbfnet_forward.5} parent=0 // pred_fallthru
    _
  %v23 = vld [vmem:[%s0] sm:$0xf]
  %v24 = vld [vmem:[%s1] sm:$0xf]
  %v25 = vld [vmem:[%s1 + $0x4] sm:$0xf]
  %v26 = vld [vmem:[%s1 + $0x8] sm:$0xf]
  %v27 = vld [vmem:[%s1 + $0xc] sm:$0xf]
  %v28 = vld [vmem:[%s1 + $0x10] sm:$0xf]
  %v29 = vld [vmem:[%s1 + $0x14] sm:$0xf]
  %v30 = vld [vmem:[%s1 + $0x18] sm:$0xf]
  %v31 = vld [vmem:[%s1 + $0x1c] sm:$0xf]
  %v32 = vld [vmem:[%s2] sm:$0x1]
  %v34 = vlaneseq
  %v35 = vshrl.u32 %v34, 7
  %v36 = vsub.s32 0, %v35
  %v37 = vrot.slane %v32, %v36
  %v47 = vunpack.c.l.b16 %v24
  %v48 = vunpack.c.l.b16 %v25
  %v49 = vunpack.c.l.b16 %v26
  %v50 = vunpack.c.l.b16 %v27
  %v51 = vunpack.c.l.b16 %v28
  %v52 = vunpack.c.l.b16 %v29
  %v53 = vunpack.c.l.b16 %v30
  %v54 = vunpack.c.l.b16 %v31
  %v55 = vpack.c.b16 %v48, %v47
  %v56 = vpack.c.b16 %v50, %v49
  %v57 = vpack.c.b16 %v52, %v51
  %v58 = vpack.c.b16 %v54, %v53
  %vm63 = vcmask 523264
  %v65 = vsel %vm63, %v23, 0
  %67 = vmatprep.subr.bf16.mxu0 0
  %68 = vmatpush1.bf16.msra.mxu0 %v55
  %69 = vmatprep.subr.bf16.mxu0 0
  %70 = vmatpush1.bf16.msra.mxu0 %v56
  %71 = vmatprep.subr.bf16.mxu0 0
  %72 = vmatpush1.bf16.msra.mxu0 %v57
  %73 = vmatprep.subr.bf16.mxu0 0
  %74 = vmatpush1.bf16.msra.mxu0 %v58
  %75 = vmatprep.subr.bf16.mxu0 0
  %76 = vmatpush1.bf16.msra.mxu0 0
  %77 = vmatprep.subr.bf16.mxu0 0
  %78 = vmatpush1.bf16.msra.mxu0 0
  %79 = vmatprep.subr.bf16.mxu0 0
  %80 = vmatpush1.bf16.msra.mxu0 0
  %81 = vmatprep.subr.bf16.mxu0 0
  %82 = vmatpush1.bf16.msra.mxu0 0
  %83 = vmatprep.subr.bf16.mxu0 0
  %84 = vmatpush1.bf16.msra.mxu0 0
  %85 = vmatprep.subr.bf16.mxu0 0
  %86 = vmatpush1.bf16.msra.mxu0 0
  %87 = vmatprep.subr.bf16.mxu0 0
  %88 = vmatpush1.bf16.msra.mxu0 0
  %89 = vmatprep.subr.bf16.mxu0 0
  %90 = vmatpush1.bf16.msra.mxu0 0
  %91 = vmatprep.subr.bf16.mxu0 0
  %92 = vmatpush1.bf16.msra.mxu0 0
  %93 = vmatprep.subr.bf16.mxu0 0
  %94 = vmatpush1.bf16.msra.mxu0 0
  %95 = vmatprep.subr.bf16.mxu0 0
  %96 = vmatpush1.bf16.msra.mxu0 0
  %97 = vmatprep.subr.bf16.mxu0 0
  %98 = vmatpush1.bf16.msra.mxu0 0
  %99 = vmatprep.mubr.bf16.mxu0 0
  %100 = vmatmul.mubr.bf16.gmra.mrb[0].mxu0 %v65
  %v101 = vpop.f32.mrb[0].mxu0
  %v102 = vadd.f32 %v37, %v101
  %v103 = vpop.f32.mrb[0].mxu0
  %v104 = vpop.f32.mrb[0].mxu0
  %v105 = vpop.f32.mrb[0].mxu0
  %106 = vdwg.mxu0
  %v107 = vmax.f32 %v102, 0.0
  %v108 = vld [vmem:[%s3] sm:$0x1]
  %v110 = vlaneseq
  %v111 = vshrl.u32 %v110, 7
  %v112 = vsub.s32 0, %v111
  %v113 = vrot.slane %v108, %v112
  %v115 = vmul.f32 %v107, %v113
  %v116 = vsel %vm63, %v115, 0.0
  %117 = vadd.xlane.f32.xlu0 %v116
  %v118 = vpop.xlane.xlu0 %117
  %v119 = vld [vmem:[#allocation2] sm:$0x1]
  %v121 = vlaneseq
  %v122 = vshrl.u32 %v121, 7
  %v123 = vsub.s32 0, %v122
  %v124 = vrot.slane %v119, %v123
  %v126 = vadd.f32 %v118, %v124
  %vm127 = vcmask 7168
  %128 = vst.msk [vmem:[%s5] sm:$0xff] %vm127, %v126
  // Predicated region
  $region22: #{transfer_nbfnet_forward.5} parent=0 // pred_check
    _
  $region23: #{transfer_nbfnet_forward.5} parent=0 // pred_check_branch
    %130 = sbr.rel (0) target = $region25
  $region24: #{transfer_nbfnet_forward.5} parent=0 // pred_region
    _
  $region25: #{transfer_nbfnet_forward.5} parent=0 // pred_fallthru
    _
  // Predicated region
  $region26: #{transfer_nbfnet_forward.5} parent=0 // pred_check
    _
  $region27: #{transfer_nbfnet_forward.5} parent=0 // pred_check_branch
    %132 = sbr.rel (0) target = $region29
  $region28: #{transfer_nbfnet_forward.5} parent=0 // pred_region
    _
  $region29: #{transfer_nbfnet_forward.5} parent=0 // pred_fallthru
    _

// kernel: transfer_nbfnet_forward.3
$region0: #{transfer_nbfnet_forward.3}
  #allocation0 [shape = 'u32[]', space=smem, size = 0x4, offset = 0x4, fixed_abs, tag = 'smem constant byte address 0x4 - core index']
  #allocation1 [shape = 'u32[144,128]{1,0:T(1,128)}', space=vmem, size = 0x12000, scoped, tag = 'internal scratch']
  %s0 = inlined_call_operand.vmem [shape: bf16[32,32], index: 0, kind: input, shape index: {}]
  %s1 = inlined_call_operand.vmem [shape: bf16[32,128], index: 1, kind: input, shape index: {}]
  %s2 = inlined_call_operand.vmem [shape: f32[32,1], index: 2, kind: input, shape index: {}]
  %s3 = inlined_call_operand.vmem [shape: f32[32,1], index: 3, kind: input, shape index: {}]
  %s4 = inlined_call_operand.vmem [shape: bf16[32,32], index: 4, kind: input, shape index: {}]
  %s5 = inlined_call_operand.vmem [shape: bf16[128,96], index: 5, kind: input, shape index: {}]
  %s6 = inlined_call_operand.vmem [shape: f32[1,32], index: 6, kind: input, shape index: {}]
  %s7 = inlined_call_operand.vmem [shape: f32[32,32], index: 7, kind: output, shape index: {}]
  %s8 = sld [smem:[#allocation0]]
  $region61: #{transfer_nbfnet_forward.3} parent=0
    _
  %s10 = ssub.s32 1, %s8
  %s11 = scalar_select 0, %s10, %s8
  loop: start=0, step=1, limit=4
  $region2: #{transfer_nbfnet_forward.3} parent=0 // loop_pre_header
    _
  $region3: #{transfer_nbfnet_forward.3} parent=0 // loop_header
    %s13 = sphi 0, %s17
    %p14 = scmp.ge.s32.totalorder %s13, 4
    %s23 = sphi 0, %s25
    %s26 = sphi 0, %s23
    %s27 = sphi 0, %s26
    %s43 = sphi 0, %s27
    %s49 = sphi 0, %s51
    %s52 = sphi 0, %s49
    %s53 = sphi 0, %s52
    %s69 = sphi 0, %s53
    %s75 = sphi 0, %s77
    %s78 = sphi 0, %s75
    %s79 = sphi 0, %s78
    %s95 = sphi 0, %s79
    %s101 = sphi 0, %s103
    %s104 = sphi 0, %s101
    %s105 = sphi 0, %s104
    %s121 = sphi 0, %s105
    %s125 = sphi 0, %s125
    %s127 = sphi 0, %s125
    %s128 = sphi 0, %s127
    %s142 = sphi 0, %s128
    %s146 = sphi 0, %s146
    %s148 = sphi 0, %s146
    %s149 = sphi 0, %s148
    %s163 = sphi 0, %s149
    %s167 = sphi 0, %s167
    %s169 = sphi 0, %s167
    %s170 = sphi 0, %s169
    %s184 = sphi 0, %s170
    %s190 = sphi 0, %s192
    %s193 = sphi 0, %s190
    %s194 = sphi 0, %s193
    %s210 = sphi 0, %s194
  $region4: #{transfer_nbfnet_forward.3} parent=0 // loop_header_branch
    %16 = sbr.rel (%p14) target = $region8
  $region5: #{transfer_nbfnet_forward.3} parent=0 // loop_body
    %s18 = ssub.s32 %s13, 1
    %s19 = ssub.s32 %s13, 2
    %s20 = sadd.s32 %s13, 1
    %s21 = ssub.s32 %s13, %s20
    %p22 = scmp.eq.s32.totalorder %s21, 0
    %s24 = sadd.s32 %s23, 1
    %s25 = scalar_select %p22, %s23, %s24
    %p28 = pneg %p22
    %p29 = scmp.eq.s32.totalorder %s13, 1
    %p30 = por %p28, %p29
    %p31 = scmp.ne.s32.totalorder %s23, %s26
    %p32 = scmp.eq.s32.totalorder %s13, 0
    %p33 = por %p31, %p32
    %p34 = scmp.ne.s32.totalorder %s23, %s26
    %p35 = scmp.eq.s32.totalorder %s18, 1
    %p36 = por %p34, %p35
    %p37 = scmp.ne.s32.totalorder %s26, %s27
    %p38 = scmp.eq.s32.totalorder %s18, 0
    %p39 = por %p37, %p38
    %p40 = scmp.ne.s32.totalorder %s26, %s27
    %p41 = scmp.eq.s32.totalorder %s19, 1
    %p42 = por %p40, %p41
    %p44 = scmp.ne.s32.totalorder %s27, %s43
    %p45 = scmp.eq.s32.totalorder %s19, 0
    %p46 = por %p44, %p45
    %s47 = ssub.s32 %s13, %s20
    %p48 = scmp.eq.s32.totalorder %s47, 0
    %s50 = sadd.s32 %s49, 1
    %s51 = scalar_select %p48, %s49, %s50
    %p54 = pneg %p48
    %p55 = scmp.eq.s32.totalorder %s13, 1
    %p56 = por %p54, %p55
    %p57 = scmp.ne.s32.totalorder %s49, %s52
    %p58 = scmp.eq.s32.totalorder %s13, 0
    %p59 = por %p57, %p58
    %p60 = scmp.ne.s32.totalorder %s49, %s52
    %p61 = scmp.eq.s32.totalorder %s18, 1
    %p62 = por %p60, %p61
    %p63 = scmp.ne.s32.totalorder %s52, %s53
    %p64 = scmp.eq.s32.totalorder %s18, 0
    %p65 = por %p63, %p64
    %p66 = scmp.ne.s32.totalorder %s52, %s53
    %p67 = scmp.eq.s32.totalorder %s19, 1
    %p68 = por %p66, %p67
    %p70 = scmp.ne.s32.totalorder %s53, %s69
    %p71 = scmp.eq.s32.totalorder %s19, 0
    %p72 = por %p70, %p71
    %s73 = ssub.s32 %s13, %s20
    %p74 = scmp.eq.s32.totalorder %s73, 0
    %s76 = sadd.s32 %s75, 1
    %s77 = scalar_select %p74, %s75, %s76
    %p80 = pneg %p74
    %p81 = scmp.eq.s32.totalorder %s13, 1
    %p82 = por %p80, %p81
    %p83 = scmp.ne.s32.totalorder %s75, %s78
    %p84 = scmp.eq.s32.totalorder %s13, 0
    %p85 = por %p83, %p84
    %p86 = scmp.ne.s32.totalorder %s75, %s78
    %p87 = scmp.eq.s32.totalorder %s18, 1
    %p88 = por %p86, %p87
    %p89 = scmp.ne.s32.totalorder %s78, %s79
    %p90 = scmp.eq.s32.totalorder %s18, 0
    %p91 = por %p89, %p90
    %p92 = scmp.ne.s32.totalorder %s78, %s79
    %p93 = scmp.eq.s32.totalorder %s19, 1
    %p94 = por %p92, %p93
    %p96 = scmp.ne.s32.totalorder %s79, %s95
    %p97 = scmp.eq.s32.totalorder %s19, 0
    %p98 = por %p96, %p97
    %s99 = ssub.s32 %s13, %s20
    %p100 = scmp.eq.s32.totalorder %s99, 0
    %s102 = sadd.s32 %s101, 1
    %s103 = scalar_select %p100, %s101, %s102
    %p106 = pneg %p100
    %p107 = scmp.eq.s32.totalorder %s13, 1
    %p108 = por %p106, %p107
    %p109 = scmp.ne.s32.totalorder %s101, %s104
    %p110 = scmp.eq.s32.totalorder %s13, 0
    %p111 = por %p109, %p110
    %p112 = scmp.ne.s32.totalorder %s101, %s104
    %p113 = scmp.eq.s32.totalorder %s18, 1
    %p114 = por %p112, %p113
    %p115 = scmp.ne.s32.totalorder %s104, %s105
    %p116 = scmp.eq.s32.totalorder %s18, 0
    %p117 = por %p115, %p116
    %p118 = scmp.ne.s32.totalorder %s104, %s105
    %p119 = scmp.eq.s32.totalorder %s19, 1
    %p120 = por %p118, %p119
    %p122 = scmp.ne.s32.totalorder %s105, %s121
    %p123 = scmp.eq.s32.totalorder %s19, 0
    %p124 = por %p122, %p123
    %s126 = sadd.s32 %s125, 1
    %p129 = scmp.eq.s32.totalorder %s13, 1
    %p130 = scmp.ne.s32.totalorder %s125, %s127
    %p131 = scmp.eq.s32.totalorder %s13, 0
    %p132 = por %p130, %p131
    %p133 = scmp.ne.s32.totalorder %s125, %s127
    %p134 = scmp.eq.s32.totalorder %s18, 1
    %p135 = por %p133, %p134
    %p136 = scmp.ne.s32.totalorder %s127, %s128
    %p137 = scmp.eq.s32.totalorder %s18, 0
    %p138 = por %p136, %p137
    %p139 = scmp.ne.s32.totalorder %s127, %s128
    %p140 = scmp.eq.s32.totalorder %s19, 1
    %p141 = por %p139, %p140
    %p143 = scmp.ne.s32.totalorder %s128, %s142
    %p144 = scmp.eq.s32.totalorder %s19, 0
    %p145 = por %p143, %p144
    %s147 = sadd.s32 %s146, 1
    %p150 = scmp.eq.s32.totalorder %s13, 1
    %p151 = scmp.ne.s32.totalorder %s146, %s148
    %p152 = scmp.eq.s32.totalorder %s13, 0
    %p153 = por %p151, %p152
    %p154 = scmp.ne.s32.totalorder %s146, %s148
    %p155 = scmp.eq.s32.totalorder %s18, 1
    %p156 = por %p154, %p155
    %p157 = scmp.ne.s32.totalorder %s148, %s149
    %p158 = scmp.eq.s32.totalorder %s18, 0
    %p159 = por %p157, %p158
    %p160 = scmp.ne.s32.totalorder %s148, %s149
    %p161 = scmp.eq.s32.totalorder %s19, 1
    %p162 = por %p160, %p161
    %p164 = scmp.ne.s32.totalorder %s149, %s163
    %p165 = scmp.eq.s32.totalorder %s19, 0
    %p166 = por %p164, %p165
    %s168 = sadd.s32 %s167, 1
    %p171 = scmp.eq.s32.totalorder %s13, 1
    %p172 = scmp.ne.s32.totalorder %s167, %s169
    %p173 = scmp.eq.s32.totalorder %s13, 0
    %p174 = por %p172, %p173
    %p175 = scmp.ne.s32.totalorder %s167, %s169
    %p176 = scmp.eq.s32.totalorder %s18, 1
    %p177 = por %p175, %p176
    %p178 = scmp.ne.s32.totalorder %s169, %s170
    %p179 = scmp.eq.s32.totalorder %s18, 0
    %p180 = por %p178, %p179
    %p181 = scmp.ne.s32.totalorder %s169, %s170
    %p182 = scmp.eq.s32.totalorder %s19, 1
    %p183 = por %p181, %p182
    %p185 = scmp.ne.s32.totalorder %s170, %s184
    %p186 = scmp.eq.s32.totalorder %s19, 0
    %p187 = por %p185, %p186
    %s188 = ssub.s32 %s13, %s20
    %p189 = scmp.eq.s32.totalorder %s188, 0
    %s191 = sadd.s32 %s190, 1
    %s192 = scalar_select %p189, %s190, %s191
    %p195 = pneg %p189
    %p196 = scmp.eq.s32.totalorder %s13, 1
    %p197 = por %p195, %p196
    %p198 = scmp.ne.s32.totalorder %s190, %s193
    %p199 = scmp.eq.s32.totalorder %s13, 0
    %p200 = por %p198, %p199
    %p201 = scmp.ne.s32.totalorder %s190, %s193
    %p202 = scmp.eq.s32.totalorder %s18, 1
    %p203 = por %p201, %p202
    %p204 = scmp.ne.s32.totalorder %s193, %s194
    %p205 = scmp.eq.s32.totalorder %s18, 0
    %p206 = por %p204, %p205
    %p207 = scmp.ne.s32.totalorder %s193, %s194
    %p208 = scmp.eq.s32.totalorder %s19, 1
    %p209 = por %p207, %p208
    %p211 = scmp.ne.s32.totalorder %s194, %s210
    %p212 = scmp.eq.s32.totalorder %s19, 0
    %p213 = por %p211, %p212
    %p214 = scmp.le.s32.totalorder 1, %s13
    %p215 = scmp.lt.s32.totalorder %s13, 3
    %p216 = pnand %p214, %p215
    %p217 = pneg %p216
    // Predicated region
    $region9: #{transfer_nbfnet_forward.3} parent=5 // pred_check
      _
    $region10: #{transfer_nbfnet_forward.3} parent=5 // pred_check_branch
      %219 = sbr.rel (%p216) target = $region12
    $region11: #{transfer_nbfnet_forward.3} parent=5 // pred_region
      %s220 = ssub.s32 %s13, 1
      // Predicated region
      $region13: #{transfer_nbfnet_forward.3} parent=11 // pred_check
        %p221 = pneg %p138
      $region14: #{transfer_nbfnet_forward.3} parent=11 // pred_check_branch
        %223 = sbr.rel (%p221) target = $region16
      $region15: #{transfer_nbfnet_forward.3} parent=11 // pred_region
        _
      $region16: #{transfer_nbfnet_forward.3} parent=11 // pred_fallthru
        _
      // Predicated region
      $region17: #{transfer_nbfnet_forward.3} parent=11 // pred_check
        %p224 = pneg %p159
      $region18: #{transfer_nbfnet_forward.3} parent=11 // pred_check_branch
        %226 = sbr.rel (%p224) target = $region20
      $region19: #{transfer_nbfnet_forward.3} parent=11 // pred_region
        _
      $region20: #{transfer_nbfnet_forward.3} parent=11 // pred_fallthru
        _
      // Predicated region
      $region21: #{transfer_nbfnet_forward.3} parent=11 // pred_check
        %p227 = pneg %p180
      $region22: #{transfer_nbfnet_forward.3} parent=11 // pred_check_branch
        %229 = sbr.rel (%p227) target = $region24
      $region23: #{transfer_nbfnet_forward.3} parent=11 // pred_region
        _
      $region24: #{transfer_nbfnet_forward.3} parent=11 // pred_fallthru
        _
    $region12: #{transfer_nbfnet_forward.3} parent=5 // pred_fallthru
      _
    %p230 = scmp.lt.s32.totalorder %s13, 2
    // Predicated region
    $region25: #{transfer_nbfnet_forward.3} parent=5 // pred_check
      %p231 = pneg %p230
    $region26: #{transfer_nbfnet_forward.3} parent=5 // pred_check_branch
      %233 = sbr.rel (%p231) target = $region28
    $region27: #{transfer_nbfnet_forward.3} parent=5 // pred_region
      // Predicated region
      $region29: #{transfer_nbfnet_forward.3} parent=27 // pred_check
        %p234 = pneg %p33
      $region30: #{transfer_nbfnet_forward.3} parent=27 // pred_check_branch
        %236 = sbr.rel (%p234) target = $region32
      $region31: #{transfer_nbfnet_forward.3} parent=27 // pred_region
        %s237 = smul.u32 2, %s13
        %p238 = scmp.lt.s32.totalorder %s237, 3
        %s239 = scalar_select %p238, %s237, 3
        %s240 = smul.addr %s239, 4
        %s241 = scalar_lea.vmem %s0, %s240
        %s242 = smul.u32 2, %s13
      $region32: #{transfer_nbfnet_forward.3} parent=27 // pred_fallthru
        _
      // Predicated region
      $region33: #{transfer_nbfnet_forward.3} parent=27 // pred_check
        %p243 = pneg %p59
      $region34: #{transfer_nbfnet_forward.3} parent=27 // pred_check_branch
        %245 = sbr.rel (%p243) target = $region36
      $region35: #{transfer_nbfnet_forward.3} parent=27 // pred_region
        %s246 = smul.u32 2, %s13
        %p247 = scmp.lt.s32.totalorder %s246, 3
        %s248 = scalar_select %p247, %s246, 3
        %s249 = smul.addr %s248, 4
        %s250 = scalar_lea.vmem %s1, %s249
        %s251 = smul.u32 2, %s13
      $region36: #{transfer_nbfnet_forward.3} parent=27 // pred_fallthru
        _
      // Predicated region
      $region37: #{transfer_nbfnet_forward.3} parent=27 // pred_check
        %p252 = pneg %p85
      $region38: #{transfer_nbfnet_forward.3} parent=27 // pred_check_branch
        %254 = sbr.rel (%p252) target = $region40
      $region39: #{transfer_nbfnet_forward.3} parent=27 // pred_region
        %s255 = smul.u32 2, %s13
        %p256 = scmp.lt.s32.totalorder %s255, 3
        %s257 = scalar_select %p256, %s255, 3
        %s258 = smul.addr %s257, 8
        %s259 = scalar_lea.vmem %s2, %s258
        %s260 = smul.u32 2, %s13
      $region40: #{transfer_nbfnet_forward.3} parent=27 // pred_fallthru
        _
      // Predicated region
      $region41: #{transfer_nbfnet_forward.3} parent=27 // pred_check
        %p261 = pneg %p111
      $region42: #{transfer_nbfnet_forward.3} parent=27 // pred_check_branch
        %263 = sbr.rel (%p261) target = $region44
      $region43: #{transfer_nbfnet_forward.3} parent=27 // pred_region
        %s264 = smul.u32 2, %s13
        %p265 = scmp.lt.s32.totalorder %s264, 3
        %s266 = scalar_select %p265, %s264, 3
        %s267 = smul.addr %s266, 8
        %s268 = scalar_lea.vmem %s3, %s267
        %s269 = smul.u32 2, %s13
      $region44: #{transfer_nbfnet_forward.3} parent=27 // pred_fallthru
        _
    $region28: #{transfer_nbfnet_forward.3} parent=5 // pred_fallthru
      _
    %p270 = scmp.le.s32.totalorder 1, %s13
    %p271 = scmp.lt.s32.totalorder %s13, 3
    %p272 = pnand %p270, %p271
    %p273 = pneg %p272
    // Predicated region
    $region45: #{transfer_nbfnet_forward.3} parent=5 // pred_check
      _
    $region46: #{transfer_nbfnet_forward.3} parent=5 // pred_check_branch
      %275 = sbr.rel (%p272) target = $region48
    $region47: #{transfer_nbfnet_forward.3} parent=5 // pred_region
      %s276 = ssub.s32 %s13, 1
      %s277 = smul.u32 2, %s18
      %p278 = scmp.lt.s32.totalorder %s277, 3
      %s279 = scalar_select %p278, %s277, 3
      %s280 = smul.addr %s279, 4
      %s281 = scalar_lea.vmem %s0, %s280
      %p282 = pneg %p39
      %p283 = pneg %p36
      %s284 = smul.u32 2, %s18
      %p285 = scmp.lt.s32.totalorder %s284, 3
      %s286 = scalar_select %p285, %s284, 3
      %s287 = smul.addr %s286, 4
      %s288 = scalar_lea.vmem %s1, %s287
      %p289 = pneg %p65
      %p290 = pneg %p62
      %s291 = smul.u32 2, %s18
      %p292 = scmp.lt.s32.totalorder %s291, 3
      %s293 = scalar_select %p292, %s291, 3
      %s294 = smul.addr %s293, 8
      %s295 = scalar_lea.vmem %s2, %s294
      %p296 = pneg %p91
      %p297 = pneg %p88
      %s298 = smul.u32 2, %s18
      %p299 = scmp.lt.s32.totalorder %s298, 3
      %s300 = scalar_select %p299, %s298, 3
      %s301 = smul.addr %s300, 8
      %s302 = scalar_lea.vmem %s3, %s301
      %p303 = pneg %p117
      %p304 = pneg %p114
      %p305 = pneg %p138
      %p306 = pneg %p135
      %p307 = pneg %p159
      %p308 = pneg %p156
      %p309 = pneg %p180
      %p310 = pneg %p177
      %p311 = pneg %p206
      %p312 = pneg %p203
      %s313 = smul.u32 2, %s18
      %p314 = scmp.lt.s32.totalorder %s313, 3
      %s315 = scalar_select %p314, %s313, 3
      %s316 = smul.addr %s315, 8
      %s317 = scalar_lea.vmem %s7, %s316
      %s318 = smul.u32 2, %s18
      %p319 = scmp.lt.s32.totalorder %s318, 3
      %s320 = scalar_select %p319, %s318, 3
      %s321 = smul.addr %s320, 4
      %s322 = scalar_lea.vmem %s0, %s321
      %s323 = smul.u32 2, %s18
      %s324 = smul.u32 2, %s18
      %p325 = scmp.lt.s32.totalorder %s324, 3
      %s326 = scalar_select %p325, %s324, 3
      %s327 = smul.addr %s326, 4
      %s328 = scalar_lea.vmem %s1, %s327
      %s329 = smul.u32 2, %s18
      %s330 = smul.u32 2, %s18
      %p331 = scmp.lt.s32.totalorder %s330, 3
      %s332 = scalar_select %p331, %s330, 3
      %s333 = smul.addr %s332, 8
      %s334 = scalar_lea.vmem %s2, %s333
      %s335 = smul.u32 2, %s18
      %s336 = smul.u32 2, %s18
      %p337 = scmp.lt.s32.totalorder %s336, 3
      %s338 = scalar_select %p337, %s336, 3
      %s339 = smul.addr %s338, 8
      %s340 = scalar_lea.vmem %s3, %s339
      %s341 = smul.u32 2, %s18
      %s342 = smul.u32 2, %s18
      %p343 = scmp.lt.s32.totalorder %s342, 3
      %s344 = scalar_select %p343, %s342, 3
      %s345 = smul.addr %s344, 8
      %s346 = scalar_lea.vmem %s7, %s345
      %s347 = smul.u32 2, %s18
      %v349 = vld [vmem:[%s328] sm:$0xf]
      %v350 = vld [vmem:[%s328 + $0x4] sm:$0xf]
      %v351 = vld [vmem:[%s5] sm:$0xf]
      %v352 = vld [vmem:[%s5 + $0x4] sm:$0xf]
      %v353 = vld [vmem:[%s5 + $0x8] sm:$0xf]
      %v354 = vld [vmem:[%s5 + $0xc] sm:$0xf]
      %v355 = vld [vmem:[%s5 + $0x10] sm:$0xf]
      %v356 = vld [vmem:[%s5 + $0x14] sm:$0xf]
      %v357 = vld [vmem:[%s5 + $0x18] sm:$0xf]
      %v358 = vld [vmem:[%s5 + $0x1c] sm:$0xf]
      %v359 = vld [vmem:[%s5 + $0x20] sm:$0xf]
      %v360 = vld [vmem:[%s5 + $0x24] sm:$0xf]
      %v361 = vld [vmem:[%s5 + $0x28] sm:$0xf]
      %v362 = vld [vmem:[%s5 + $0x2c] sm:$0xf]
      %v363 = vld [vmem:[%s5 + $0x30] sm:$0xf]
      %v364 = vld [vmem:[%s5 + $0x34] sm:$0xf]
      %v365 = vld [vmem:[%s5 + $0x38] sm:$0xf]
      %v366 = vld [vmem:[%s5 + $0x3c] sm:$0xf]
      %v369 = vunpack.c.l.b16 %v349
      %v370 = vunpack.c.l.b16 %v350
      %v371 = vpack.c.b16 %v370, %v369
      %v389 = vunpack.c.l.b16 %v351
      %v390 = vunpack.c.l.b16 %v352
      %v391 = vunpack.c.l.b16 %v353
      %v392 = vunpack.c.l.b16 %v354
      %v393 = vunpack.c.l.b16 %v355
      %v394 = vunpack.c.l.b16 %v356
      %v395 = vunpack.c.l.b16 %v357
      %v396 = vunpack.c.l.b16 %v358
      %v397 = vunpack.c.l.b16 %v359
      %v398 = vunpack.c.l.b16 %v360
      %v399 = vunpack.c.l.b16 %v361
      %v400 = vunpack.c.l.b16 %v362
      %v401 = vunpack.c.l.b16 %v363
      %v402 = vunpack.c.l.b16 %v364
      %v403 = vunpack.c.l.b16 %v365
      %v404 = vunpack.c.l.b16 %v366
      %v405 = vpack.c.b16 %v390, %v389
      %v406 = vpack.c.b16 %v392, %v391
      %v407 = vpack.c.b16 %v394, %v393
      %v408 = vpack.c.b16 %v396, %v395
      %v409 = vpack.c.b16 %v398, %v397
      %v410 = vpack.c.b16 %v400, %v399
      %v411 = vpack.c.b16 %v402, %v401
      %v412 = vpack.c.b16 %v404, %v403
      %421 = vmatprep.subr.bf16.mxu0 0
      %422 = vmatpush1.bf16.msra.mxu0 %v405
      %423 = vmatprep.subr.bf16.mxu0 0
      %424 = vmatpush1.bf16.msra.mxu0 %v406
      %425 = vmatprep.subr.bf16.mxu0 0
      %426 = vmatpush1.bf16.msra.mxu0 %v407
      %427 = vmatprep.subr.bf16.mxu0 0
      %428 = vmatpush1.bf16.msra.mxu0 %v408
      %429 = vmatprep.subr.bf16.mxu0 0
      %430 = vmatpush1.bf16.msra.mxu0 %v409
      %431 = vmatprep.subr.bf16.mxu0 0
      %432 = vmatpush1.bf16.msra.mxu0 %v410
      %433 = vmatprep.subr.bf16.mxu0 0
      %434 = vmatpush1.bf16.msra.mxu0 %v411
      %435 = vmatprep.subr.bf16.mxu0 0
      %436 = vmatpush1.bf16.msra.mxu0 %v412
      %437 = vmatprep.subr.bf16.mxu0 0
      %438 = vmatpush1.bf16.msra.mxu0 0
      %439 = vmatprep.subr.bf16.mxu0 0
      %440 = vmatpush1.bf16.msra.mxu0 0
      %441 = vmatprep.subr.bf16.mxu0 0
      %442 = vmatpush1.bf16.msra.mxu0 0
      %443 = vmatprep.subr.bf16.mxu0 0
      %444 = vmatpush1.bf16.msra.mxu0 0
      %445 = vmatprep.subr.bf16.mxu0 0
      %446 = vmatpush1.bf16.msra.mxu0 0
      %447 = vmatprep.subr.bf16.mxu0 0
      %448 = vmatpush1.bf16.msra.mxu0 0
      %449 = vmatprep.subr.bf16.mxu0 0
      %450 = vmatpush1.bf16.msra.mxu0 0
      %451 = vmatprep.subr.bf16.mxu0 0
      %452 = vmatpush1.bf16.msra.mxu0 0
      %453 = vmatprep.mubr.bf16.mxu0 0
      %454 = vmatmul.mubr.bf16.gmra.mrb[0].mxu0 %v371
      %v455 = vpop.f32.mrb[0].mxu0
      %v456 = vadd.f32 0.0, %v455
      %v457 = vpop.f32.mrb[0].mxu0
      %v458 = vpop.f32.mrb[0].mxu0
      %v459 = vadd.f32 0.0, %v458
      %v460 = vpop.f32.mrb[0].mxu0
      %461 = vdwg.mxu0
      %v462 = vld [vmem:[%s322] sm:$0xf]
      %v463 = vld [vmem:[%s322 + $0x4] sm:$0xf]
      %v464 = vld [vmem:[%s4] sm:$0xf]
      %v465 = vld [vmem:[%s4 + $0x4] sm:$0xf]
      %v466 = vld [vmem:[%s4 + $0x8] sm:$0xf]
      %v467 = vld [vmem:[%s4 + $0xc] sm:$0xf]
      %v470 = vunpack.c.l.b16 %v462
      %v471 = vunpack.c.l.b16 %v463
      %v472 = vpack.c.b16 %v471, %v470
      %v477 = vunpack.c.l.b16 %v464
      %v478 = vunpack.c.l.b16 %v465
      %v479 = vunpack.c.l.b16 %v466
      %v480 = vunpack.c.l.b16 %v467
      %v481 = vpack.c.b16 %v478, %v477
      %v482 = vpack.c.b16 %v480, %v479
      %vm485 = vcmask 261120
      %v487 = vsel %vm485, %v472, 0
      %489 = vmatprep.subr.bf16.mxu0 0
      %490 = vmatpush1.bf16.msra.mxu0 %v481
      %491 = vmatprep.subr.bf16.mxu0 0
      %492 = vmatpush1.bf16.msra.mxu0 %v482
      %493 = vmatprep.subr.bf16.mxu0 0
      %494 = vmatpush1.bf16.msra.mxu0 0
      %495 = vmatprep.subr.bf16.mxu0 0
      %496 = vmatpush1.bf16.msra.mxu0 0
      %497 = vmatprep.subr.bf16.mxu0 0
      %498 = vmatpush1.bf16.msra.mxu0 0
      %499 = vmatprep.subr.bf16.mxu0 0
      %500 = vmatpush1.bf16.msra.mxu0 0
      %501 = vmatprep.subr.bf16.mxu0 0
      %502 = vmatpush1.bf16.msra.mxu0 0
      %503 = vmatprep.subr.bf16.mxu0 0
      %504 = vmatpush1.bf16.msra.mxu0 0
      %505 = vmatprep.subr.bf16.mxu0 0
      %506 = vmatpush1.bf16.msra.mxu0 0
      %507 = vmatprep.subr.bf16.mxu0 0
      %508 = vmatpush1.bf16.msra.mxu0 0
      %509 = vmatprep.subr.bf16.mxu0 0
      %510 = vmatpush1.bf16.msra.mxu0 0
      %511 = vmatprep.subr.bf16.mxu0 0
      %512 = vmatpush1.bf16.msra.mxu0 0
      %513 = vmatprep.subr.bf16.mxu0 0
      %514 = vmatpush1.bf16.msra.mxu0 0
      %515 = vmatprep.subr.bf16.mxu0 0
      %516 = vmatpush1.bf16.msra.mxu0 0
      %517 = vmatprep.subr.bf16.mxu0 0
      %518 = vmatpush1.bf16.msra.mxu0 0
      %519 = vmatprep.subr.bf16.mxu0 0
      %520 = vmatpush1.bf16.msra.mxu0 0
      %521 = vmatprep.mubr.bf16.mxu0 0
      %522 = vmatmul.mubr.bf16.gmra.mrb[0].mxu0 %v487
      %v523 = vpop.f32.mrb[0].mxu0
      %v524 = vadd.f32 %v456, %v523
      %v525 = vpop.f32.mrb[0].mxu0
      %v526 = vpop.f32.mrb[0].mxu0
      %v527 = vadd.f32 %v459, %v526
      %v528 = vpop.f32.mrb[0].mxu0
      %529 = vdwg.mxu0
      %v530 = vld [vmem:[%s334] sm:$0xff]
      %v531 = vld [vmem:[%s334 + $0x8] sm:$0xff]
      %533 = vset.pattern.permute.xlu0 0
      %534 = vperm.xlu0 %533, %v530
      %v535 = vpop.permute.xlu0 %534
      %538 = vset.pattern.permute.xlu0 0
      %539 = vperm.xlu0 %538, %v531
      %v540 = vpop.permute.xlu0 %539
      %v542 = vmul.f32 %v535, %v456
      %v543 = vmul.f32 %v540, %v459
      %546 = vrot.lane.b32.xlu0 %v542, 96
      %v547 = vpop.permute.xlu0 %546
      %548 = vrot.lane.b32.xlu0 %v543, 96
      %v549 = vpop.permute.xlu0 %548
      %v552 = vadd.f32 %v524, %v547
      %v553 = vadd.f32 %v527, %v549
      %v554 = vld [vmem:[%s340] sm:$0xff]
      %v555 = vld [vmem:[%s340 + $0x8] sm:$0xff]
      %557 = vset.pattern.permute.xlu0 0
      %558 = vperm.xlu0 %557, %v554
      %v559 = vpop.permute.xlu0 %558
      %562 = vset.pattern.permute.xlu0 0
      %563 = vperm.xlu0 %562, %v555
      %v564 = vpop.permute.xlu0 %563
      %v566 = vmul.f32 %v559, %v456
      %v567 = vmul.f32 %v564, %v459
      %570 = vrot.lane.b32.xlu0 %v566, 64
      %v571 = vpop.permute.xlu0 %570
      %572 = vrot.lane.b32.xlu0 %v567, 64
      %v573 = vpop.permute.xlu0 %572
      %v576 = vadd.f32 %v552, %v571
      %v577 = vadd.f32 %v553, %v573
      %v578 = vld [vmem:[%s6] sm:$0x1]
      %v580 = vlaneseq
      %v581 = vshrl.u32 %v580, 7
      %v582 = vsub.s32 0, %v581
      %v583 = vrot.slane %v578, %v582
      %v585 = vadd.f32 %v576, %v583
      %v586 = vadd.f32 %v577, %v583
      %v587 = vmax.f32 %v585, 0.0
      %v588 = vmax.f32 %v586, 0.0
      %589 = vst.msk [vmem:[%s346] sm:$0xff] %vm485, %v587
      %590 = vst.msk [vmem:[%s346 + $0x8] sm:$0xff] %vm485, %v588
      %s591 = smul.u32 2, %s18
      %p592 = scmp.lt.s32.totalorder %s591, 3
      %s593 = scalar_select %p592, %s591, 3
      %s594 = smul.addr %s593, 8
      %s595 = scalar_lea.vmem %s7, %s594
      // Predicated region
      $region49: #{transfer_nbfnet_forward.3} parent=47 // pred_check
        %p596 = pneg %p203
      $region50: #{transfer_nbfnet_forward.3} parent=47 // pred_check_branch
        %598 = sbr.rel (%p596) target = $region52
      $region51: #{transfer_nbfnet_forward.3} parent=47 // pred_region
        %s599 = smul.u32 2, %s18
      $region52: #{transfer_nbfnet_forward.3} parent=47 // pred_fallthru
        _
    $region48: #{transfer_nbfnet_forward.3} parent=5 // pred_fallthru
      _
    %p600 = scmp.le.s32.totalorder 2, %s13
    // Predicated region
    $region53: #{transfer_nbfnet_forward.3} parent=5 // pred_check
      %p601 = pneg %p600
    $region54: #{transfer_nbfnet_forward.3} parent=5 // pred_check_branch
      %603 = sbr.rel (%p601) target = $region56
    $region55: #{transfer_nbfnet_forward.3} parent=5 // pred_region
      %s604 = ssub.s32 %s13, 2
      // Predicated region
      $region57: #{transfer_nbfnet_forward.3} parent=55 // pred_check
        %p605 = pneg %p209
      $region58: #{transfer_nbfnet_forward.3} parent=55 // pred_check_branch
        %607 = sbr.rel (%p605) target = $region60
      $region59: #{transfer_nbfnet_forward.3} parent=55 // pred_region
        %s608 = smul.u32 2, %s19
        %p609 = scmp.lt.s32.totalorder %s608, 3
        %s610 = scalar_select %p609, %s608, 3
        %s611 = smul.addr %s610, 8
        %s612 = scalar_lea.vmem %s7, %s611
      $region60: #{transfer_nbfnet_forward.3} parent=55 // pred_fallthru
        _
    $region56: #{transfer_nbfnet_forward.3} parent=5 // pred_fallthru
      _
  $region6: #{transfer_nbfnet_forward.3} parent=0 // loop_footer
    %s17 = sadd.s32 1, %s13
  $region7: #{transfer_nbfnet_forward.3} parent=0 // loop_footer_branch
    %12 = sbr.rel target = $region3
  $region8: #{transfer_nbfnet_forward.3} parent=0 // loop_exit
    _

</llo_original>
